<compile_context>
chip_gen: v5e
topology: v5e:2x2
jax: 0.10.0
libtpu: 0.0.40
codegen_flags: <defaults>
</compile_context>

<pallas_src>
import functools

import jax
import jax.numpy as jnp
from jax.experimental import pallas as pl
from jax.experimental.pallas import tpu as pltpu


def _round_up(x: int, m: int) -> int:
    return ((x + m - 1) // m) * m


# -----------------------------------------------------------------------------
# Kernel
# -----------------------------------------------------------------------------
def _cond_emb_kernel(cls_ref, tbl_ref, fused_tab_ref, w_eff_ref, b1_eff_ref,
                     w2_ref, b2_ref, out_ref):
    # --- class contribution: one-hot(ids) @ (emb_table @ W1_cls)  (MXU gather)
    cls_ids = cls_ref[...]                                   # (TB, 1) int32
    tb = cls_ids.shape[0]
    c_pad = fused_tab_ref.shape[0]                           # padded num_classes
    iota = jax.lax.broadcasted_iota(jnp.int32, (tb, c_pad), 1)
    one_hot = (iota == cls_ids).astype(fused_tab_ref.dtype)  # (TB, c_pad)
    cls_contrib = jnp.dot(one_hot, fused_tab_ref[...],
                          preferred_element_type=jnp.float32)  # (TB, n_pad) f32

    # --- tabular contribution: x_tbl @ (W_tbl @ W1_tbl), zero-padded K
    tbl_contrib = jnp.dot(tbl_ref[...], w_eff_ref[...],
                          preferred_element_type=jnp.float32)  # (TB, n_pad) f32

    # --- pre-SiLU hidden (bias pre-fused), SiLU in f32
    h = cls_contrib + tbl_contrib + b1_eff_ref[...]
    h = h * jax.nn.sigmoid(h)

    # --- final Linear
    out = jnp.dot(h.astype(w2_ref.dtype), w2_ref[...],
                  preferred_element_type=jnp.float32) + b2_ref[...]
    out_ref[...] = out.astype(out_ref.dtype)


# -----------------------------------------------------------------------------
# Parameter packing (one-time, f32 fusion then bf16 cast + lane/K padding)
# -----------------------------------------------------------------------------
def pack_params(params, compute_dtype=jnp.bfloat16, lane_pad=128):
    num_classes, _ = params["emb_table"].shape
    tab_in = params["w_tbl"].shape[0]
    out_dim = params["w2"].shape[1]

    n_pad = _round_up(out_dim, lane_pad)      # lane/N dim of every matmul + output
    c_pad = _round_up(num_classes, lane_pad)  # K of one-hot matmul (zero rows free)
    k_tab = _round_up(tab_in, lane_pad)       # K of tabular matmul

    fused_table = params["emb_table"] @ params["w1_cls"]        # (C, out)
    w_eff = params["w_tbl"] @ params["w1_tbl"]                  # (tab_in, out)
    b1_eff = params["b1"] + params["b_tbl"] @ params["w1_tbl"]  # (1, out)

    def pad2(a, rows, cols):
        return jnp.pad(a, ((0, rows - a.shape[0]), (0, cols - a.shape[1])))

    return {
        "fused_table": pad2(fused_table, c_pad, n_pad).astype(compute_dtype),
        "w_eff": pad2(w_eff, k_tab, n_pad).astype(compute_dtype),
        "b1_eff": pad2(b1_eff, 1, n_pad).astype(jnp.float32),
        "w2": pad2(params["w2"], n_pad, n_pad).astype(compute_dtype),
        "b2": pad2(params["b2"], 1, n_pad).astype(jnp.float32),
    }


# -----------------------------------------------------------------------------
# Forward wrapper
# -----------------------------------------------------------------------------
@functools.partial(
    jax.jit,
    static_argnames=("out_dim", "block_b", "out_dtype", "single_buffer_weights"))
def _forward_impl(x_cls, x_tbl, packed, *, out_dim, block_b, out_dtype,
                  single_buffer_weights):
    B = x_cls.shape[0]
    tab_in = x_tbl.shape[1]
    c_pad, n_pad = packed["fused_table"].shape
    k_tab = packed["w_eff"].shape[0]
    compute_dtype = packed["fused_table"].dtype
    w_itemsize = jnp.dtype(compute_dtype).itemsize

    # Batch tile: as large as requested, clamped to the (sublane-rounded) batch.
    tb = _round_up(min(block_b, _round_up(B, 16)), 16)
    bp = _round_up(B, tb)

    cls_ids = jnp.pad(x_cls.astype(jnp.int32).reshape(B, 1), ((0, bp - B), (0, 0)))
    tbl = jnp.pad(x_tbl.astype(compute_dtype),
                  ((0, bp - B), (0, k_tab - tab_in)))          # zero-pad batch + K

    grid = (bp // tb,)

    weight_kwargs = {}
    if single_buffer_weights:
        # Constant index_map -> block never changes -> one resident buffer.
        weight_kwargs = dict(pipeline_mode=pl.Buffered(1))

    def wspec(rows, cols):
        return pl.BlockSpec((rows, cols), lambda i: (0, 0), **weight_kwargs)

    # Explicit VMEM budget: double-buffered activations/output + resident weights.
    wbufs = 1 if single_buffer_weights else 2
    est = (2 * tb * (4 + k_tab * w_itemsize + n_pad * jnp.dtype(out_dtype).itemsize)
           + wbufs * w_itemsize * (c_pad * n_pad + k_tab * n_pad + n_pad * n_pad)
           + wbufs * 4 * (2 * n_pad)
           + (8 << 20))                       # headroom for compiler scratch
    vmem_limit = int(min(max(est, 32 << 20), 64 << 20))

    out = pl.pallas_call(
        _cond_emb_kernel,
        out_shape=jax.ShapeDtypeStruct((bp, n_pad), out_dtype),
        grid_spec=pltpu.PrefetchScalarGridSpec(
            num_scalar_prefetch=0,
            grid=grid,
            in_specs=[
                pl.BlockSpec((tb, 1), lambda i: (i, 0)),      # class ids
                pl.BlockSpec((tb, k_tab), lambda i: (i, 0)),  # tabular features
                wspec(c_pad, n_pad),                          # emb_table @ W1_cls
                wspec(k_tab, n_pad),                          # W_tbl @ W1_tbl
                wspec(1, n_pad),                              # fused bias (f32)
                wspec(n_pad, n_pad),                          # W2
                wspec(1, n_pad),                              # b2 (f32)
            ],
            out_specs=pl.BlockSpec((tb, n_pad), lambda i: (i, 0)),
        ),
        compiler_params=pltpu.CompilerParams(
            dimension_semantics=("parallel",),   # v7x: shard batch grid over 2 TCs
            vmem_limit_bytes=vmem_limit,
        ),
    )(cls_ids, tbl, packed["fused_table"], packed["w_eff"], packed["b1_eff"],
      packed["w2"], packed["b2"])
    return out[:B, :out_dim]


def condition_embedding_forward(x_cls, x_tbl, packed, out_dim, *, block_b=256,
                                out_dtype=jnp.bfloat16):
    """x_cls: (B,) int class ids, x_tbl: (B, tabular_in_dim) float."""
    kwargs = dict(out_dim=out_dim, block_b=block_b, out_dtype=out_dtype)
    try:
        return _forward_impl(x_cls, x_tbl, packed, single_buffer_weights=True,
                             **kwargs)
    except Exception:
        # Installed JAX/libtpu rejected single-buffered pipeline_mode on the
        # top-level grid; fall back to default (double-buffered) weights.
        return _forward_impl(x_cls, x_tbl, packed, single_buffer_weights=False,
                             **kwargs)


# -----------------------------------------------------------------------------
# References
# -----------------------------------------------------------------------------
def _reference_forward_f32(x_cls, x_tbl, params):
    """Original module math, all f32 (matches the PyTorch forward)."""
    cls_emb = params["emb_table"][x_cls.astype(jnp.int32)]
    tbl_emb = x_tbl @ params["w_tbl"] + params["b_tbl"]
    h = jnp.concatenate([cls_emb, tbl_emb], axis=-1)
    w1 = jnp.concatenate([params["w1_cls"], params["w1_tbl"]], axis=0)
    h = h @ w1 + params["b1"]
    h = h * jax.nn.sigmoid(h)
    return h @ params["w2"] + params["b2"]


def _reference_forward_matched(x_cls, x_tbl, packed, out_dim):
    """Same fused/bf16-operand math as the kernel (f32 accumulation)."""
    cls_contrib = packed["fused_table"][x_cls.astype(jnp.int32)].astype(jnp.float32)
    k_tab = packed["w_eff"].shape[0]
    tbl = jnp.pad(x_tbl, ((0, 0), (0, k_tab - x_tbl.shape[1])))
    tbl_contrib = jnp.dot(tbl.astype(packed["w_eff"].dtype), packed["w_eff"],
                          preferred_element_type=jnp.float32)
    h = cls_contrib + tbl_contrib + packed["b1_eff"]
    h = h * jax.nn.sigmoid(h)
    out = jnp.dot(h.astype(packed["w2"].dtype), packed["w2"],
                  preferred_element_type=jnp.float32) + packed["b2"]
    return out[:, :out_dim]


def init_params(key, num_classes, cls_emb_dim, tabular_in_dim,
                tabular_out_dim, out_dim):
    ks = jax.random.split(key, 8)
    return {
        "emb_table": jax.random.normal(ks[0], (num_classes, cls_emb_dim), jnp.float32),
        "w_tbl": jax.random.normal(ks[1], (tabular_in_dim, tabular_out_dim), jnp.float32) * 0.1,
        "b_tbl": jax.random.normal(ks[2], (1, tabular_out_dim), jnp.float32) * 0.1,
        "w1_cls": jax.random.normal(ks[3], (cls_emb_dim, out_dim), jnp.float32) * 0.1,
        "w1_tbl": jax.random.normal(ks[4], (tabular_out_dim, out_dim), jnp.float32) * 0.1,
        "b1": jax.random.normal(ks[5], (1, out_dim), jnp.float32) * 0.1,
        "w2": jax.random.normal(ks[6], (out_dim, out_dim), jnp.float32) * 0.1,
        "b2": jax.random.normal(ks[7], (1, out_dim), jnp.float32) * 0.1,
    }


if __name__ == "__main__":
    key = jax.random.PRNGKey(0)
    B = 8
    num_classes = 10
    cls_emb_dim = 16
    tabular_in_dim = 8
    tabular_out_dim = 16
    out_dim = 32

    k_params, k_cls, k_tbl = jax.random.split(key, 3)
    params = init_params(k_params, num_classes, cls_emb_dim,
                         tabular_in_dim, tabular_out_dim, out_dim)
    packed = pack_params(params, compute_dtype=jnp.bfloat16)

    x_cls = jax.random.randint(k_cls, (B,), 0, num_classes, dtype=jnp.int32)
    x_tbl = jax.random.normal(k_tbl, (B, tabular_in_dim), jnp.float32)

    out = condition_embedding_forward(x_cls, x_tbl, packed, out_dim, block_b=256)
    out = jax.block_until_ready(out)
    assert out.shape == (B, out_dim), out.shape
    out_f32 = out.astype(jnp.float32)

    # Tight check vs a reference applying the same fusion + bf16 operand casts.
    ref_matched = _reference_forward_matched(x_cls, x_tbl, packed, out_dim)
    assert jnp.allclose(out_f32, ref_matched, atol=2e-2, rtol=2e-2), \
        "mismatch vs cast-matched reference"

    # Loose check vs the original full-f32 module math (bf16 rounding expected).
    ref_f32 = _reference_forward_f32(x_cls, x_tbl, params)
    assert jnp.allclose(out_f32, ref_f32, atol=5e-2, rtol=5e-2), \
        "mismatch vs f32 module reference"

    print("KERNEL_OK")
</pallas_src>

<mosaic_0001>
module attributes {stable_mosaic.version = 11 : i64} {
  func.func @_cond_emb_kernel(%arg0: i32, %arg1: memref<16x1xi32, #tpu.memory_space<vmem>>, %arg2: memref<16x128xbf16, #tpu.memory_space<vmem>>, %arg3: memref<128x128xbf16, #tpu.memory_space<vmem>>, %arg4: memref<128x128xbf16, #tpu.memory_space<vmem>>, %arg5: memref<1x128xf32, #tpu.memory_space<vmem>>, %arg6: memref<128x128xbf16, #tpu.memory_space<vmem>>, %arg7: memref<1x128xf32, #tpu.memory_space<vmem>>, %arg8: memref<16x128xbf16, #tpu.memory_space<vmem>>) attributes {dimension_semantics = [#tpu.dimension_semantics<parallel>], iteration_bounds = array<i64: 1>, scalar_prefetch = 0 : i64, scratch_operands = 0 : i64, tpu.core_type = #tpu.core_type<tc>, window_params = [{transform_indices = @transform_0, window_bounds = array<i64: 16, 1>}, {transform_indices = @transform_1, window_bounds = array<i64: 16, 128>}, {pipeline_mode = #tpu.pipeline_mode<synchronous>, transform_indices = @transform_2, window_bounds = array<i64: 128, 128>}, {pipeline_mode = #tpu.pipeline_mode<synchronous>, transform_indices = @transform_3, window_bounds = array<i64: 128, 128>}, {pipeline_mode = #tpu.pipeline_mode<synchronous>, transform_indices = @transform_4, window_bounds = array<i64: 1, 128>}, {pipeline_mode = #tpu.pipeline_mode<synchronous>, transform_indices = @transform_5, window_bounds = array<i64: 128, 128>}, {pipeline_mode = #tpu.pipeline_mode<synchronous>, transform_indices = @transform_6, window_bounds = array<i64: 1, 128>}, {transform_indices = @transform_7, window_bounds = array<i64: 16, 128>}]} {
    %c0 = arith.constant 0 : index
    %c0_0 = arith.constant 0 : index
    %0 = vector.load %arg1[%c0, %c0_0] : memref<16x1xi32, #tpu.memory_space<vmem>>, vector<16x1xi32>
    %1 = tpu.iota {dimensions = array<i32: 1>} : vector<16x128xi32>
    %2 = vector.broadcast %0 : vector<16x1xi32> to vector<16x128xi32>
    %3 = arith.cmpi eq, %1, %2 : vector<16x128xi32>
    %4 = arith.extui %3 : vector<16x128xi1> to vector<16x128xi32>
    %5 = arith.sitofp %4 : vector<16x128xi32> to vector<16x128xf32>
    %6 = arith.truncf %5 : vector<16x128xf32> to vector<16x128xbf16>
    %c0_1 = arith.constant 0 : index
    %c0_2 = arith.constant 0 : index
    %7 = vector.load %arg3[%c0_1, %c0_2] : memref<128x128xbf16, #tpu.memory_space<vmem>>, vector<128x128xbf16>
    %cst = arith.constant dense<0.000000e+00> : vector<16x128xf32>
    %8 = tpu.matmul %6, %7, %cst {dimension_numbers = #tpu.dot_dimension_numbers<[1], [0], [0], [1], [0, 0, 1, 1], [], []>} : vector<16x128xbf16>, vector<128x128xbf16>, vector<16x128xf32> -> vector<16x128xf32>
    %c0_3 = arith.constant 0 : index
    %c0_4 = arith.constant 0 : index
    %9 = vector.load %arg2[%c0_3, %c0_4] : memref<16x128xbf16, #tpu.memory_space<vmem>>, vector<16x128xbf16>
    %c0_5 = arith.constant 0 : index
    %c0_6 = arith.constant 0 : index
    %10 = vector.load %arg4[%c0_5, %c0_6] : memref<128x128xbf16, #tpu.memory_space<vmem>>, vector<128x128xbf16>
    %cst_7 = arith.constant dense<0.000000e+00> : vector<16x128xf32>
    %11 = tpu.matmul %9, %10, %cst_7 {dimension_numbers = #tpu.dot_dimension_numbers<[1], [0], [0], [1], [0, 0, 1, 1], [], []>} : vector<16x128xbf16>, vector<128x128xbf16>, vector<16x128xf32> -> vector<16x128xf32>
    %12 = arith.addf %8, %11 : vector<16x128xf32>
    %c0_8 = arith.constant 0 : index
    %c0_9 = arith.constant 0 : index
    %13 = vector.load %arg5[%c0_8, %c0_9] : memref<1x128xf32, #tpu.memory_space<vmem>>, vector<1x128xf32>
    %14 = vector.broadcast %13 : vector<1x128xf32> to vector<16x128xf32>
    %15 = arith.addf %12, %14 : vector<16x128xf32>
    %16 = arith.negf %15 : vector<16x128xf32>
    %17 = math.exp %16 : vector<16x128xf32>
    %cst_10 = arith.constant 1.000000e+00 : f32
    %18 = vector.broadcast %cst_10 : f32 to vector<16x128xf32>
    %19 = arith.addf %18, %17 : vector<16x128xf32>
    %20 = arith.divf %18, %19 : vector<16x128xf32>
    %21 = arith.mulf %15, %20 : vector<16x128xf32>
    %22 = arith.truncf %21 : vector<16x128xf32> to vector<16x128xbf16>
    %c0_11 = arith.constant 0 : index
    %c0_12 = arith.constant 0 : index
    %23 = vector.load %arg6[%c0_11, %c0_12] : memref<128x128xbf16, #tpu.memory_space<vmem>>, vector<128x128xbf16>
    %cst_13 = arith.constant dense<0.000000e+00> : vector<16x128xf32>
    %24 = tpu.matmul %22, %23, %cst_13 {dimension_numbers = #tpu.dot_dimension_numbers<[1], [0], [0], [1], [0, 0, 1, 1], [], []>} : vector<16x128xbf16>, vector<128x128xbf16>, vector<16x128xf32> -> vector<16x128xf32>
    %c0_14 = arith.constant 0 : index
    %c0_15 = arith.constant 0 : index
    %25 = vector.load %arg7[%c0_14, %c0_15] : memref<1x128xf32, #tpu.memory_space<vmem>>, vector<1x128xf32>
    %26 = vector.broadcast %25 : vector<1x128xf32> to vector<16x128xf32>
    %27 = arith.addf %24, %26 : vector<16x128xf32>
    %28 = arith.truncf %27 : vector<16x128xf32> to vector<16x128xbf16>
    %c0_16 = arith.constant 0 : index
    %c0_17 = arith.constant 0 : index
    %29 = vector.load %arg8[%c0_16, %c0_17] : memref<16x128xbf16, #tpu.memory_space<vmem>>, vector<16x128xbf16>
    tpu.vector_store %arg8[%c0_16, %c0_17], %28 {strides = array<i32>} : memref<16x128xbf16, #tpu.memory_space<vmem>>, vector<16x128xbf16>,
    return
  }
  func.func @transform_0(%arg0: i32) -> (i32, i32) {
    %c0_i32 = arith.constant 0 : i32
    %c0_i32_0 = arith.constant 0 : i32
    return %arg0, %c0_i32 : i32, i32
  }
  func.func @transform_1(%arg0: i32) -> (i32, i32) {
    %c0_i32 = arith.constant 0 : i32
    %c0_i32_0 = arith.constant 0 : i32
    return %arg0, %c0_i32 : i32, i32
  }
  func.func @transform_2(%arg0: i32) -> (i32, i32) {
    %c0_i32 = arith.constant 0 : i32
    %c0_i32_0 = arith.constant 0 : i32
    %c0_i32_1 = arith.constant 0 : i32
    return %c0_i32, %c0_i32_0 : i32, i32
  }
  func.func @transform_3(%arg0: i32) -> (i32, i32) {
    %c0_i32 = arith.constant 0 : i32
    %c0_i32_0 = arith.constant 0 : i32
    %c0_i32_1 = arith.constant 0 : i32
    return %c0_i32, %c0_i32_0 : i32, i32
  }
  func.func @transform_4(%arg0: i32) -> (i32, i32) {
    %c0_i32 = arith.constant 0 : i32
    %c0_i32_0 = arith.constant 0 : i32
    %c0_i32_1 = arith.constant 0 : i32
    return %c0_i32, %c0_i32_0 : i32, i32
  }
  func.func @transform_5(%arg0: i32) -> (i32, i32) {
    %c0_i32 = arith.constant 0 : i32
    %c0_i32_0 = arith.constant 0 : i32
    %c0_i32_1 = arith.constant 0 : i32
    return %c0_i32, %c0_i32_0 : i32, i32
  }
  func.func @transform_6(%arg0: i32) -> (i32, i32) {
    %c0_i32 = arith.constant 0 : i32
    %c0_i32_0 = arith.constant 0 : i32
    %c0_i32_1 = arith.constant 0 : i32
    return %c0_i32, %c0_i32_0 : i32, i32
  }
  func.func @transform_7(%arg0: i32) -> (i32, i32) {
    %c0_i32 = arith.constant 0 : i32
    %c0_i32_0 = arith.constant 0 : i32
    return %arg0, %c0_i32 : i32, i32
  }
}

module attributes {stable_mosaic.version = 11 : i64} {
  func.func @_cond_emb_kernel(%arg0: i32, %arg1: memref<16x1xi32, #tpu.memory_space<vmem>>, %arg2: memref<16x128xbf16, #tpu.memory_space<vmem>>, %arg3: memref<128x128xbf16, #tpu.memory_space<vmem>>, %arg4: memref<128x128xbf16, #tpu.memory_space<vmem>>, %arg5: memref<1x128xf32, #tpu.memory_space<vmem>>, %arg6: memref<128x128xbf16, #tpu.memory_space<vmem>>, %arg7: memref<1x128xf32, #tpu.memory_space<vmem>>, %arg8: memref<16x128xbf16, #tpu.memory_space<vmem>>) attributes {dimension_semantics = [#tpu.dimension_semantics<parallel>], iteration_bounds = array<i64: 1>, scalar_prefetch = 0 : i64, scratch_operands = 0 : i64, tpu.core_type = #tpu.core_type<tc>, window_params = [{transform_indices = @transform_0, window_bounds = array<i64: 16, 1>}, {transform_indices = @transform_1, window_bounds = array<i64: 16, 128>}, {pipeline_mode = #tpu.pipeline_mode<synchronous>, transform_indices = @transform_2, window_bounds = array<i64: 128, 128>}, {pipeline_mode = #tpu.pipeline_mode<synchronous>, transform_indices = @transform_3, window_bounds = array<i64: 128, 128>}, {pipeline_mode = #tpu.pipeline_mode<synchronous>, transform_indices = @transform_4, window_bounds = array<i64: 1, 128>}, {pipeline_mode = #tpu.pipeline_mode<synchronous>, transform_indices = @transform_5, window_bounds = array<i64: 128, 128>}, {pipeline_mode = #tpu.pipeline_mode<synchronous>, transform_indices = @transform_6, window_bounds = array<i64: 1, 128>}, {transform_indices = @transform_7, window_bounds = array<i64: 16, 128>}]} {
    %c0 = arith.constant 0 : index
    %c0_0 = arith.constant 0 : index
    %0 = vector.load %arg1[%c0, %c0_0] : memref<16x1xi32, #tpu.memory_space<vmem>>, vector<16x1xi32>
    %1 = tpu.iota {dimensions = array<i32: 1>} : vector<16x128xi32>
    %2 = vector.broadcast %0 : vector<16x1xi32> to vector<16x128xi32>
    %3 = arith.cmpi eq, %1, %2 : vector<16x128xi32>
    %4 = arith.extui %3 : vector<16x128xi1> to vector<16x128xi32>
    %5 = arith.sitofp %4 : vector<16x128xi32> to vector<16x128xf32>
    %6 = arith.truncf %5 : vector<16x128xf32> to vector<16x128xbf16>
    %c0_1 = arith.constant 0 : index
    %c0_2 = arith.constant 0 : index
    %7 = vector.load %arg3[%c0_1, %c0_2] : memref<128x128xbf16, #tpu.memory_space<vmem>>, vector<128x128xbf16>
    %cst = arith.constant dense<0.000000e+00> : vector<16x128xf32>
    %8 = tpu.matmul %6, %7, %cst {dimension_numbers = #tpu.dot_dimension_numbers<[1], [0], [0], [1], [0, 0, 1, 1], [], []>} : vector<16x128xbf16>, vector<128x128xbf16>, vector<16x128xf32> -> vector<16x128xf32>
    %c0_3 = arith.constant 0 : index
    %c0_4 = arith.constant 0 : index
    %9 = vector.load %arg2[%c0_3, %c0_4] : memref<16x128xbf16, #tpu.memory_space<vmem>>, vector<16x128xbf16>
    %c0_5 = arith.constant 0 : index
    %c0_6 = arith.constant 0 : index
    %10 = vector.load %arg4[%c0_5, %c0_6] : memref<128x128xbf16, #tpu.memory_space<vmem>>, vector<128x128xbf16>
    %cst_7 = arith.constant dense<0.000000e+00> : vector<16x128xf32>
    %11 = tpu.matmul %9, %10, %cst_7 {dimension_numbers = #tpu.dot_dimension_numbers<[1], [0], [0], [1], [0, 0, 1, 1], [], []>} : vector<16x128xbf16>, vector<128x128xbf16>, vector<16x128xf32> -> vector<16x128xf32>
    %12 = arith.addf %8, %11 : vector<16x128xf32>
    %c0_8 = arith.constant 0 : index
    %c0_9 = arith.constant 0 : index
    %13 = vector.load %arg5[%c0_8, %c0_9] : memref<1x128xf32, #tpu.memory_space<vmem>>, vector<1x128xf32>
    %14 = vector.broadcast %13 : vector<1x128xf32> to vector<16x128xf32>
    %15 = arith.addf %12, %14 : vector<16x128xf32>
    %16 = arith.negf %15 : vector<16x128xf32>
    %17 = math.exp %16 : vector<16x128xf32>
    %cst_10 = arith.constant 1.000000e+00 : f32
    %18 = vector.broadcast %cst_10 : f32 to vector<16x128xf32>
    %19 = arith.addf %18, %17 : vector<16x128xf32>
    %20 = arith.divf %18, %19 : vector<16x128xf32>
    %21 = arith.mulf %15, %20 : vector<16x128xf32>
    %22 = arith.truncf %21 : vector<16x128xf32> to vector<16x128xbf16>
    %c0_11 = arith.constant 0 : index
    %c0_12 = arith.constant 0 : index
    %23 = vector.load %arg6[%c0_11, %c0_12] : memref<128x128xbf16, #tpu.memory_space<vmem>>, vector<128x128xbf16>
    %cst_13 = arith.constant dense<0.000000e+00> : vector<16x128xf32>
    %24 = tpu.matmul %22, %23, %cst_13 {dimension_numbers = #tpu.dot_dimension_numbers<[1], [0], [0], [1], [0, 0, 1, 1], [], []>} : vector<16x128xbf16>, vector<128x128xbf16>, vector<16x128xf32> -> vector<16x128xf32>
    %c0_14 = arith.constant 0 : index
    %c0_15 = arith.constant 0 : index
    %25 = vector.load %arg7[%c0_14, %c0_15] : memref<1x128xf32, #tpu.memory_space<vmem>>, vector<1x128xf32>
    %26 = vector.broadcast %25 : vector<1x128xf32> to vector<16x128xf32>
    %27 = arith.addf %24, %26 : vector<16x128xf32>
    %28 = arith.truncf %27 : vector<16x128xf32> to vector<16x128xbf16>
    %c0_16 = arith.constant 0 : index
    %c0_17 = arith.constant 0 : index
    %29 = vector.load %arg8[%c0_16, %c0_17] : memref<16x128xbf16, #tpu.memory_space<vmem>>, vector<16x128xbf16>
    tpu.vector_store %arg8[%c0_16, %c0_17], %28 {strides = array<i32>} : memref<16x128xbf16, #tpu.memory_space<vmem>>, vector<16x128xbf16>,
    return
  }
  func.func @transform_0(%arg0: i32) -> (i32, i32) {
    %c0_i32 = arith.constant 0 : i32
    %c0_i32_0 = arith.constant 0 : i32
    return %arg0, %c0_i32 : i32, i32
  }
  func.func @transform_1(%arg0: i32) -> (i32, i32) {
    %c0_i32 = arith.constant 0 : i32
    %c0_i32_0 = arith.constant 0 : i32
    return %arg0, %c0_i32 : i32, i32
  }
  func.func @transform_2(%arg0: i32) -> (i32, i32) {
    %c0_i32 = arith.constant 0 : i32
    %c0_i32_0 = arith.constant 0 : i32
    %c0_i32_1 = arith.constant 0 : i32
    return %c0_i32, %c0_i32_0 : i32, i32
  }
  func.func @transform_3(%arg0: i32) -> (i32, i32) {
    %c0_i32 = arith.constant 0 : i32
    %c0_i32_0 = arith.constant 0 : i32
    %c0_i32_1 = arith.constant 0 : i32
    return %c0_i32, %c0_i32_0 : i32, i32
  }
  func.func @transform_4(%arg0: i32) -> (i32, i32) {
    %c0_i32 = arith.constant 0 : i32
    %c0_i32_0 = arith.constant 0 : i32
    %c0_i32_1 = arith.constant 0 : i32
    return %c0_i32, %c0_i32_0 : i32, i32
  }
  func.func @transform_5(%arg0: i32) -> (i32, i32) {
    %c0_i32 = arith.constant 0 : i32
    %c0_i32_0 = arith.constant 0 : i32
    %c0_i32_1 = arith.constant 0 : i32
    return %c0_i32, %c0_i32_0 : i32, i32
  }
  func.func @transform_6(%arg0: i32) -> (i32, i32) {
    %c0_i32 = arith.constant 0 : i32
    %c0_i32_0 = arith.constant 0 : i32
    %c0_i32_1 = arith.constant 0 : i32
    return %c0_i32, %c0_i32_0 : i32, i32
  }
  func.func @transform_7(%arg0: i32) -> (i32, i32) {
    %c0_i32 = arith.constant 0 : i32
    %c0_i32_0 = arith.constant 0 : i32
    return %arg0, %c0_i32 : i32, i32
  }
}

</mosaic_0001>

<llo_original>
// kernel: _forward_impl.1
$region0: #{_forward_impl.1}
  #allocation0 [shape = 'u32[]', space=smem, size = 0x4, offset = 0x4, fixed_abs, tag = 'smem constant byte address 0x4 - core index']
  #allocation1 [shape = 'u32[72,128]{1,0:T(1,128)}', space=vmem, size = 0x9000, scoped, tag = 'internal scratch']
  %s0 = inlined_call_operand.vmem [shape: s32[16,1], index: 0, kind: input, shape index: {}]
  %s1 = inlined_call_operand.vmem [shape: bf16[16,128], index: 1, kind: input, shape index: {}]
  %s2 = inlined_call_operand.hbm [shape: bf16[128,128], index: 2, kind: input, shape index: {}]
  %s3 = inlined_call_operand.hbm [shape: bf16[128,128], index: 3, kind: input, shape index: {}]
  %s4 = inlined_call_operand.vmem [shape: f32[1,128], index: 4, kind: input, shape index: {}]
  %s5 = inlined_call_operand.hbm [shape: bf16[128,128], index: 5, kind: input, shape index: {}]
  %s6 = inlined_call_operand.vmem [shape: f32[1,128], index: 6, kind: input, shape index: {}]
  %s7 = inlined_call_operand.vmem [shape: bf16[16,128], index: 7, kind: output, shape index: {}]
  %s8 = sld [smem:[#allocation0]]
  $region50: #{_forward_impl.1} parent=0
    _
  %s10 = ssub.s32 1, %s8
  %s11 = scalar_select 0, %s10, %s8
  $region1: #{_forward_impl.1} parent=0
    #allocation2 [shape = 'u8[32768]{0}', space=vmem, size = 0x8000, scoped, tag = 'input window, operand 2, single buffered']
    #allocation3 [shape = 's32[1]{0}', space=sflag, size = 0x4, scoped, tag = 'scoped memory for _forward_impl.1']
    #allocation4 [shape = 'u8[32768]{0}', space=vmem, size = 0x8000, scoped, tag = 'input window, operand 3, single buffered']
    #allocation5 [shape = 's32[1]{0}', space=sflag, size = 0x4, scoped, tag = 'scoped memory for _forward_impl.1']
    #allocation6 [shape = 'u8[32768]{0}', space=vmem, size = 0x8000, scoped, tag = 'input window, operand 5, single buffered']
    %12 = vsyncpa [#allocation3], 0
    %13 = vsyncpa [#allocation5], 0
    // Predicated region
    $region2: #{_forward_impl.1} parent=1 // pred_check
      _
    $region3: #{_forward_impl.1} parent=1 // pred_check_branch
      %15 = sbr.rel (0) target = $region5
    $region4: #{_forward_impl.1} parent=1 // pred_region
      _
    $region5: #{_forward_impl.1} parent=1 // pred_fallthru
      _
    // Predicated region
    $region6: #{_forward_impl.1} parent=1 // pred_check
      _
    $region7: #{_forward_impl.1} parent=1 // pred_check_branch
      %17 = sbr.rel (0) target = $region9
    $region8: #{_forward_impl.1} parent=1 // pred_region
      _
    $region9: #{_forward_impl.1} parent=1 // pred_fallthru
      _
    // Predicated region
    $region10: #{_forward_impl.1} parent=1 // pred_check
      _
    $region11: #{_forward_impl.1} parent=1 // pred_check_branch
      %19 = sbr.rel (0) target = $region13
    $region12: #{_forward_impl.1} parent=1 // pred_region
      %21 = vsyncadd [#allocation3], 0
      %s22 = sshll.u32 %s2, 4
      %s23 = int_to_ptr.hbm [resolvable:$true] %s22
      %s24 = sshll.u32 [#allocation2], 4
      %s25 = int_to_ptr.vmem [resolvable:$true] %s24
      %30 = dma.hbm_to_vmem [thread:$0]  %s23, 1024, %s25, [#allocation3], 64, 64, 4
    $region13: #{_forward_impl.1} parent=1 // pred_fallthru
      _
    // Predicated region
    $region14: #{_forward_impl.1} parent=1 // pred_check
      _
    $region15: #{_forward_impl.1} parent=1 // pred_check_branch
      %32 = sbr.rel (0) target = $region17
    $region16: #{_forward_impl.1} parent=1 // pred_region
      %34 = vsyncadd [#allocation5], 0
      %s35 = sshll.u32 %s3, 4
      %s36 = int_to_ptr.hbm [resolvable:$true] %s35
      %s37 = sshll.u32 [#allocation4], 4
      %s38 = int_to_ptr.vmem [resolvable:$true] %s37
      %43 = dma.hbm_to_vmem [thread:$0]  %s36, 1024, %s38, [#allocation5], 64, 64, 4
    $region17: #{_forward_impl.1} parent=1 // pred_fallthru
      _
    // Predicated region
    $region18: #{_forward_impl.1} parent=1 // pred_check
      _
    $region19: #{_forward_impl.1} parent=1 // pred_check_branch
      %45 = sbr.rel (0) target = $region21
    $region20: #{_forward_impl.1} parent=1 // pred_region
      _
    $region21: #{_forward_impl.1} parent=1 // pred_fallthru
      _
    // Predicated region
    $region22: #{_forward_impl.1} parent=1 // pred_check
      _
    $region23: #{_forward_impl.1} parent=1 // pred_check_branch
      %47 = sbr.rel (0) target = $region25
    $region24: #{_forward_impl.1} parent=1 // pred_region
      %49 = vsyncadd [#allocation5], 0
      %s50 = sshll.u32 %s5, 4
      %s51 = int_to_ptr.hbm [resolvable:$true] %s50
      %s52 = sshll.u32 [#allocation6], 4
      %s53 = int_to_ptr.vmem [resolvable:$true] %s52
      %58 = dma.hbm_to_vmem [thread:$0]  %s51, 1024, %s53, [#allocation5], 64, 64, 4
    $region25: #{_forward_impl.1} parent=1 // pred_fallthru
      _
    // Predicated region
    $region26: #{_forward_impl.1} parent=1 // pred_check
      _
    $region27: #{_forward_impl.1} parent=1 // pred_check_branch
      %60 = sbr.rel (0) target = $region29
    $region28: #{_forward_impl.1} parent=1 // pred_region
      _
    $region29: #{_forward_impl.1} parent=1 // pred_fallthru
      _
    // Predicated region
    $region30: #{_forward_impl.1} parent=1 // pred_check
      _
    $region31: #{_forward_impl.1} parent=1 // pred_check_branch
      %62 = sbr.rel (0) target = $region33
    $region32: #{_forward_impl.1} parent=1 // pred_region
      %64 = dma.done [#allocation3], 1024
    $region33: #{_forward_impl.1} parent=1 // pred_fallthru
      _
    // Predicated region
    $region34: #{_forward_impl.1} parent=1 // pred_check
      _
    $region35: #{_forward_impl.1} parent=1 // pred_check_branch
      %66 = sbr.rel (0) target = $region37
    $region36: #{_forward_impl.1} parent=1 // pred_region
      %68 = dma.done [#allocation5], 1024
    $region37: #{_forward_impl.1} parent=1 // pred_fallthru
      _
    // Predicated region
    $region38: #{_forward_impl.1} parent=1 // pred_check
      _
    $region39: #{_forward_impl.1} parent=1 // pred_check_branch
      %70 = sbr.rel (0) target = $region41
    $region40: #{_forward_impl.1} parent=1 // pred_region
      %72 = dma.done [#allocation5], 1024
    $region41: #{_forward_impl.1} parent=1 // pred_fallthru
      _
    %v73 = vld [vmem:[%s0] sm:$0xff]
    %v74 = vld [vmem:[%s0 + $0x8] sm:$0xff]
    %v75 = vlaneseq
    %v76 = vand.u32 %v75, 127
    %77 = vset.pattern.permute.xlu0 0
    %78 = vperm.xlu0 %77, %v73
    %v79 = vpop.permute.xlu0 %78
    %80 = vset.pattern.permute.xlu0 0
    %81 = vperm.xlu0 %80, %v74
    %v82 = vpop.permute.xlu0 %81
    %vm83 = vcmp.eq.s32.totalorder %v76, %v79
    %vm84 = vcmp.eq.s32.totalorder %v76, %v82
    %v85 = vsel %vm83, 1, 0
    %v86 = vsel %vm84, 1, 0
    %v87 = vcvt.s32.f32 %v85
    %v88 = vcvt.s32.f32 %v86
    %v89 = vpack.c.bf16 %v88, %v87
    %v90 = vld [vmem:[#allocation2] sm:$0xf]
    %v91 = vld [vmem:[#allocation2 + $0x4] sm:$0xf]
    %v92 = vld [vmem:[#allocation2 + $0x8] sm:$0xf]
    %v93 = vld [vmem:[#allocation2 + $0xc] sm:$0xf]
    %v94 = vld [vmem:[#allocation2 + $0x10] sm:$0xf]
    %v95 = vld [vmem:[#allocation2 + $0x14] sm:$0xf]
    %v96 = vld [vmem:[#allocation2 + $0x18] sm:$0xf]
    %v97 = vld [vmem:[#allocation2 + $0x1c] sm:$0xf]
    %v98 = vld [vmem:[#allocation2 + $0x20] sm:$0xf]
    %v99 = vld [vmem:[#allocation2 + $0x24] sm:$0xf]
    %v100 = vld [vmem:[#allocation2 + $0x28] sm:$0xf]
    %v101 = vld [vmem:[#allocation2 + $0x2c] sm:$0xf]
    %v102 = vld [vmem:[#allocation2 + $0x30] sm:$0xf]
    %v103 = vld [vmem:[#allocation2 + $0x34] sm:$0xf]
    %v104 = vld [vmem:[#allocation2 + $0x38] sm:$0xf]
    %v105 = vld [vmem:[#allocation2 + $0x3c] sm:$0xf]
    %v106 = vld [vmem:[%s1] sm:$0xf]
    %v107 = vld [vmem:[%s1 + $0x4] sm:$0xf]
    %v108 = vld [vmem:[#allocation4] sm:$0xf]
    %v109 = vld [vmem:[#allocation4 + $0x4] sm:$0xf]
    %v110 = vld [vmem:[#allocation4 + $0x8] sm:$0xf]
    %v111 = vld [vmem:[#allocation4 + $0xc] sm:$0xf]
    %v112 = vld [vmem:[#allocation4 + $0x10] sm:$0xf]
    %v113 = vld [vmem:[#allocation4 + $0x14] sm:$0xf]
    %v114 = vld [vmem:[#allocation4 + $0x18] sm:$0xf]
    %v115 = vld [vmem:[#allocation4 + $0x1c] sm:$0xf]
    %v116 = vld [vmem:[#allocation4 + $0x20] sm:$0xf]
    %v117 = vld [vmem:[#allocation4 + $0x24] sm:$0xf]
    %v118 = vld [vmem:[#allocation4 + $0x28] sm:$0xf]
    %v119 = vld [vmem:[#allocation4 + $0x2c] sm:$0xf]
    %v120 = vld [vmem:[#allocation4 + $0x30] sm:$0xf]
    %v121 = vld [vmem:[#allocation4 + $0x34] sm:$0xf]
    %v122 = vld [vmem:[#allocation4 + $0x38] sm:$0xf]
    %v123 = vld [vmem:[#allocation4 + $0x3c] sm:$0xf]
    %v126 = vunpack.c.l.b16 %v106
    %v127 = vunpack.c.l.b16 %v107
    %v128 = vpack.c.b16 %v127, %v126
    %v146 = vunpack.c.l.b16 %v108
    %v147 = vunpack.c.l.b16 %v109
    %v148 = vunpack.c.l.b16 %v110
    %v149 = vunpack.c.l.b16 %v111
    %v150 = vunpack.c.l.b16 %v112
    %v151 = vunpack.c.l.b16 %v113
    %v152 = vunpack.c.l.b16 %v114
    %v153 = vunpack.c.l.b16 %v115
    %v154 = vunpack.c.l.b16 %v116
    %v155 = vunpack.c.l.b16 %v117
    %v156 = vunpack.c.l.b16 %v118
    %v157 = vunpack.c.l.b16 %v119
    %v158 = vunpack.c.l.b16 %v120
    %v159 = vunpack.c.l.b16 %v121
    %v160 = vunpack.c.l.b16 %v122
    %v161 = vunpack.c.l.b16 %v123
    %v162 = vpack.c.b16 %v147, %v146
    %v163 = vpack.c.b16 %v149, %v148
    %v164 = vpack.c.b16 %v151, %v150
    %v165 = vpack.c.b16 %v153, %v152
    %v166 = vpack.c.b16 %v155, %v154
    %v167 = vpack.c.b16 %v157, %v156
    %v168 = vpack.c.b16 %v159, %v158
    %v169 = vpack.c.b16 %v161, %v160
    %178 = vmatpush.bf16.msra.mxu0 %v169
    %179 = vmatpush.bf16.msra.mxu0 %v168
    %180 = vmatpush.bf16.msra.mxu0 %v167
    %181 = vmatpush.bf16.msra.mxu0 %v166
    %182 = vmatpush.bf16.msra.mxu0 %v165
    %183 = vmatpush.bf16.msra.mxu0 %v164
    %184 = vmatpush.bf16.msra.mxu0 %v163
    %185 = vmatpush.bf16.msra.mxu0 %v162
    %186 = vmatmul.bf16.gmra.mxu0 %v128
    %v187 = vpop.f32.mrf.mxu0
    %v188 = vadd.f32 0.0, %v187
    %v189 = vpop.f32.mrf.mxu0
    %v190 = vadd.f32 0.0, %v189
    %191 = vdwg.mxu0
    %v208 = vunpack.c.l.b16 %v90
    %v209 = vunpack.c.l.b16 %v91
    %v210 = vunpack.c.l.b16 %v92
    %v211 = vunpack.c.l.b16 %v93
    %v212 = vunpack.c.l.b16 %v94
    %v213 = vunpack.c.l.b16 %v95
    %v214 = vunpack.c.l.b16 %v96
    %v215 = vunpack.c.l.b16 %v97
    %v216 = vunpack.c.l.b16 %v98
    %v217 = vunpack.c.l.b16 %v99
    %v218 = vunpack.c.l.b16 %v100
    %v219 = vunpack.c.l.b16 %v101
    %v220 = vunpack.c.l.b16 %v102
    %v221 = vunpack.c.l.b16 %v103
    %v222 = vunpack.c.l.b16 %v104
    %v223 = vunpack.c.l.b16 %v105
    %v224 = vpack.c.b16 %v209, %v208
    %v225 = vpack.c.b16 %v211, %v210
    %v226 = vpack.c.b16 %v213, %v212
    %v227 = vpack.c.b16 %v215, %v214
    %v228 = vpack.c.b16 %v217, %v216
    %v229 = vpack.c.b16 %v219, %v218
    %v230 = vpack.c.b16 %v221, %v220
    %v231 = vpack.c.b16 %v223, %v222
    %240 = vmatpush.bf16.msra.mxu0 %v231
    %241 = vmatpush.bf16.msra.mxu0 %v230
    %242 = vmatpush.bf16.msra.mxu0 %v229
    %243 = vmatpush.bf16.msra.mxu0 %v228
    %244 = vmatpush.bf16.msra.mxu0 %v227
    %245 = vmatpush.bf16.msra.mxu0 %v226
    %246 = vmatpush.bf16.msra.mxu0 %v225
    %247 = vmatpush.bf16.msra.mxu0 %v224
    %248 = vmatmul.bf16.gmra.mxu0 %v89
    %v249 = vpop.f32.mrf.mxu0
    %v250 = vadd.f32 %v188, %v249
    %v251 = vpop.f32.mrf.mxu0
    %v252 = vadd.f32 %v190, %v251
    %253 = vdwg.mxu0
    %v254 = vld [vmem:[%s4] sm:$0x1]
    %v256 = vperm.slane %v254, 0
    %v258 = vadd.f32 %v250, %v256
    %v259 = vadd.f32 %v252, %v256
    %v260 = vxor.u32 %v258, 2147483648
    %v261 = vxor.u32 %v259, 2147483648
    %v262 = vmul.f32 %v260, 1.442695
    %v263 = vpow.pop %v262
    %v264 = vmul.f32 %v261, 1.442695
    %v265 = vpow.pop %v264
    %v266 = vadd.f32 %v263, 1.0
    %v267 = vadd.f32 %v265, 1.0
    %v268 = vrcp.pop %v266
    %v269 = vmul.f32 %v266, %v268
    %v270 = vsub.f32 1.0, %v269
    %v271 = vmul.f32 %v268, %v270
    %v272 = vadd.f32 %v268, %v271
    %vm273 = vweird.f32 %v266
    %vm274 = vweird.f32 %v268
    %vm275 = vmor %vm273, %vm274
    %v276 = vsel %vm275, %v268, %v272
    %v277 = vand.u32 2147483647, %v266
    %vm278 = vcmp.eq.f32.partialorder %v277, 8.507059e+37
    %v279 = vand.u32 %v266, 2147483648
    %v280 = vor.u32 1.1754944e-38, %v279
    %v281 = vsel %vm278, %v280, %v276
    %v282 = vmul.f32 1.0, %v281
    %v283 = vrcp.pop %v267
    %v284 = vmul.f32 %v267, %v283
    %v285 = vsub.f32 1.0, %v284
    %v286 = vmul.f32 %v283, %v285
    %v287 = vadd.f32 %v283, %v286
    %vm288 = vweird.f32 %v267
    %vm289 = vweird.f32 %v283
    %vm290 = vmor %vm288, %vm289
    %v291 = vsel %vm290, %v283, %v287
    %v292 = vand.u32 2147483647, %v267
    %vm293 = vcmp.eq.f32.partialorder %v292, 8.507059e+37
    %v294 = vand.u32 %v267, 2147483648
    %v295 = vor.u32 1.1754944e-38, %v294
    %v296 = vsel %vm293, %v295, %v291
    %v297 = vmul.f32 1.0, %v296
    %v298 = vmul.f32 %v258, %v282
    %v299 = vmul.f32 %v259, %v297
    %v300 = vpack.c.bf16 %v299, %v298
    %v301 = vld [vmem:[#allocation6] sm:$0xf]
    %v302 = vld [vmem:[#allocation6 + $0x4] sm:$0xf]
    %v303 = vld [vmem:[#allocation6 + $0x8] sm:$0xf]
    %v304 = vld [vmem:[#allocation6 + $0xc] sm:$0xf]
    %v305 = vld [vmem:[#allocation6 + $0x10] sm:$0xf]
    %v306 = vld [vmem:[#allocation6 + $0x14] sm:$0xf]
    %v307 = vld [vmem:[#allocation6 + $0x18] sm:$0xf]
    %v308 = vld [vmem:[#allocation6 + $0x1c] sm:$0xf]
    %v309 = vld [vmem:[#allocation6 + $0x20] sm:$0xf]
    %v310 = vld [vmem:[#allocation6 + $0x24] sm:$0xf]
    %v311 = vld [vmem:[#allocation6 + $0x28] sm:$0xf]
    %v312 = vld [vmem:[#allocation6 + $0x2c] sm:$0xf]
    %v313 = vld [vmem:[#allocation6 + $0x30] sm:$0xf]
    %v314 = vld [vmem:[#allocation6 + $0x34] sm:$0xf]
    %v315 = vld [vmem:[#allocation6 + $0x38] sm:$0xf]
    %v316 = vld [vmem:[#allocation6 + $0x3c] sm:$0xf]
    %v317 = vld [vmem:[%s6] sm:$0x1]
    %v319 = vperm.slane %v317, 0
    %v337 = vunpack.c.l.b16 %v301
    %v338 = vunpack.c.l.b16 %v302
    %v339 = vunpack.c.l.b16 %v303
    %v340 = vunpack.c.l.b16 %v304
    %v341 = vunpack.c.l.b16 %v305
    %v342 = vunpack.c.l.b16 %v306
    %v343 = vunpack.c.l.b16 %v307
    %v344 = vunpack.c.l.b16 %v308
    %v345 = vunpack.c.l.b16 %v309
    %v346 = vunpack.c.l.b16 %v310
    %v347 = vunpack.c.l.b16 %v311
    %v348 = vunpack.c.l.b16 %v312
    %v349 = vunpack.c.l.b16 %v313
    %v350 = vunpack.c.l.b16 %v314
    %v351 = vunpack.c.l.b16 %v315
    %v352 = vunpack.c.l.b16 %v316
    %v353 = vpack.c.b16 %v338, %v337
    %v354 = vpack.c.b16 %v340, %v339
    %v355 = vpack.c.b16 %v342, %v341
    %v356 = vpack.c.b16 %v344, %v343
    %v357 = vpack.c.b16 %v346, %v345
    %v358 = vpack.c.b16 %v348, %v347
    %v359 = vpack.c.b16 %v350, %v349
    %v360 = vpack.c.b16 %v352, %v351
    %369 = vmatpush.bf16.msra.mxu0 %v360
    %370 = vmatpush.bf16.msra.mxu0 %v359
    %371 = vmatpush.bf16.msra.mxu0 %v358
    %372 = vmatpush.bf16.msra.mxu0 %v357
    %373 = vmatpush.bf16.msra.mxu0 %v356
    %374 = vmatpush.bf16.msra.mxu0 %v355
    %375 = vmatpush.bf16.msra.mxu0 %v354
    %376 = vmatpush.bf16.msra.mxu0 %v353
    %377 = vmatmul.bf16.gmra.mxu0 %v300
    %v378 = vpop.f32.mrf.mxu0
    %v379 = vadd.f32 %v319, %v378
    %v380 = vpop.f32.mrf.mxu0
    %v381 = vadd.f32 %v319, %v380
    %382 = vdwg.mxu0
    %v383 = vpack.c.bf16 %v379, %v379
    %v384 = vpack.c.bf16 %v381, %v381
    %385 = vst [vmem:[%s7] sm:$0xf] %v383
    %386 = vst [vmem:[%s7 + $0x4] sm:$0xf] %v384
    // Predicated region
    $region42: #{_forward_impl.1} parent=1 // pred_check
      _
    $region43: #{_forward_impl.1} parent=1 // pred_check_branch
      %388 = sbr.rel (0) target = $region45
    $region44: #{_forward_impl.1} parent=1 // pred_region
      _
    $region45: #{_forward_impl.1} parent=1 // pred_fallthru
      _
    // Predicated region
    $region46: #{_forward_impl.1} parent=1 // pred_check
      _
    $region47: #{_forward_impl.1} parent=1 // pred_check_branch
      %390 = sbr.rel (0) target = $region49
    $region48: #{_forward_impl.1} parent=1 // pred_region
      _
    $region49: #{_forward_impl.1} parent=1 // pred_fallthru
      _
    %391 = vsyncpa [#allocation3], 1
    %392 = vsyncpa [#allocation5], 1

// kernel: _forward_impl.1
$region0: #{_forward_impl.1}
  #allocation0 [shape = 'u32[]', space=smem, size = 0x4, offset = 0x4, fixed_abs, tag = 'smem constant byte address 0x4 - core index']
  #allocation1 [shape = 'u32[72,128]{1,0:T(1,128)}', space=vmem, size = 0x9000, scoped, tag = 'internal scratch']
  %s0 = inlined_call_operand.vmem [shape: s32[16,1], index: 0, kind: input, shape index: {}]
  %s1 = inlined_call_operand.vmem [shape: bf16[16,128], index: 1, kind: input, shape index: {}]
  %s2 = inlined_call_operand.hbm [shape: bf16[128,128], index: 2, kind: input, shape index: {}]
  %s3 = inlined_call_operand.hbm [shape: bf16[128,128], index: 3, kind: input, shape index: {}]
  %s4 = inlined_call_operand.vmem [shape: f32[1,128], index: 4, kind: input, shape index: {}]
  %s5 = inlined_call_operand.hbm [shape: bf16[128,128], index: 5, kind: input, shape index: {}]
  %s6 = inlined_call_operand.vmem [shape: f32[1,128], index: 6, kind: input, shape index: {}]
  %s7 = inlined_call_operand.vmem [shape: bf16[16,128], index: 7, kind: output, shape index: {}]
  %s8 = sld [smem:[#allocation0]]
  $region50: #{_forward_impl.1} parent=0
    _
  %s10 = ssub.s32 1, %s8
  %s11 = scalar_select 0, %s10, %s8
  $region1: #{_forward_impl.1} parent=0
    #allocation2 [shape = 'u8[32768]{0}', space=vmem, size = 0x8000, scoped, tag = 'input window, operand 2, single buffered']
    #allocation3 [shape = 's32[1]{0}', space=sflag, size = 0x4, scoped, tag = 'scoped memory for _forward_impl.1']
    #allocation4 [shape = 'u8[32768]{0}', space=vmem, size = 0x8000, scoped, tag = 'input window, operand 3, single buffered']
    #allocation5 [shape = 's32[1]{0}', space=sflag, size = 0x4, scoped, tag = 'scoped memory for _forward_impl.1']
    #allocation6 [shape = 'u8[32768]{0}', space=vmem, size = 0x8000, scoped, tag = 'input window, operand 5, single buffered']
    %12 = vsyncpa [#allocation3], 0
    %13 = vsyncpa [#allocation5], 0
    // Predicated region
    $region2: #{_forward_impl.1} parent=1 // pred_check
      _
    $region3: #{_forward_impl.1} parent=1 // pred_check_branch
      %15 = sbr.rel (0) target = $region5
    $region4: #{_forward_impl.1} parent=1 // pred_region
      _
    $region5: #{_forward_impl.1} parent=1 // pred_fallthru
      _
    // Predicated region
    $region6: #{_forward_impl.1} parent=1 // pred_check
      _
    $region7: #{_forward_impl.1} parent=1 // pred_check_branch
      %17 = sbr.rel (0) target = $region9
    $region8: #{_forward_impl.1} parent=1 // pred_region
      _
    $region9: #{_forward_impl.1} parent=1 // pred_fallthru
      _
    // Predicated region
    $region10: #{_forward_impl.1} parent=1 // pred_check
      _
    $region11: #{_forward_impl.1} parent=1 // pred_check_branch
      %19 = sbr.rel (0) target = $region13
    $region12: #{_forward_impl.1} parent=1 // pred_region
      %21 = vsyncadd [#allocation3], 0
      %s22 = sshll.u32 %s2, 4
      %s23 = int_to_ptr.hbm [resolvable:$true] %s22
      %s24 = sshll.u32 [#allocation2], 4
      %s25 = int_to_ptr.vmem [resolvable:$true] %s24
      %30 = dma.hbm_to_vmem [thread:$0]  %s23, 1024, %s25, [#allocation3], 64, 64, 4
    $region13: #{_forward_impl.1} parent=1 // pred_fallthru
      _
    // Predicated region
    $region14: #{_forward_impl.1} parent=1 // pred_check
      _
    $region15: #{_forward_impl.1} parent=1 // pred_check_branch
      %32 = sbr.rel (0) target = $region17
    $region16: #{_forward_impl.1} parent=1 // pred_region
      %34 = vsyncadd [#allocation5], 0
      %s35 = sshll.u32 %s3, 4
      %s36 = int_to_ptr.hbm [resolvable:$true] %s35
      %s37 = sshll.u32 [#allocation4], 4
      %s38 = int_to_ptr.vmem [resolvable:$true] %s37
      %43 = dma.hbm_to_vmem [thread:$0]  %s36, 1024, %s38, [#allocation5], 64, 64, 4
    $region17: #{_forward_impl.1} parent=1 // pred_fallthru
      _
    // Predicated region
    $region18: #{_forward_impl.1} parent=1 // pred_check
      _
    $region19: #{_forward_impl.1} parent=1 // pred_check_branch
      %45 = sbr.rel (0) target = $region21
    $region20: #{_forward_impl.1} parent=1 // pred_region
      _
    $region21: #{_forward_impl.1} parent=1 // pred_fallthru
      _
    // Predicated region
    $region22: #{_forward_impl.1} parent=1 // pred_check
      _
    $region23: #{_forward_impl.1} parent=1 // pred_check_branch
      %47 = sbr.rel (0) target = $region25
    $region24: #{_forward_impl.1} parent=1 // pred_region
      %49 = vsyncadd [#allocation5], 0
      %s50 = sshll.u32 %s5, 4
      %s51 = int_to_ptr.hbm [resolvable:$true] %s50
      %s52 = sshll.u32 [#allocation6], 4
      %s53 = int_to_ptr.vmem [resolvable:$true] %s52
      %58 = dma.hbm_to_vmem [thread:$0]  %s51, 1024, %s53, [#allocation5], 64, 64, 4
    $region25: #{_forward_impl.1} parent=1 // pred_fallthru
      _
    // Predicated region
    $region26: #{_forward_impl.1} parent=1 // pred_check
      _
    $region27: #{_forward_impl.1} parent=1 // pred_check_branch
      %60 = sbr.rel (0) target = $region29
    $region28: #{_forward_impl.1} parent=1 // pred_region
      _
    $region29: #{_forward_impl.1} parent=1 // pred_fallthru
      _
    // Predicated region
    $region30: #{_forward_impl.1} parent=1 // pred_check
      _
    $region31: #{_forward_impl.1} parent=1 // pred_check_branch
      %62 = sbr.rel (0) target = $region33
    $region32: #{_forward_impl.1} parent=1 // pred_region
      %64 = dma.done [#allocation3], 1024
    $region33: #{_forward_impl.1} parent=1 // pred_fallthru
      _
    // Predicated region
    $region34: #{_forward_impl.1} parent=1 // pred_check
      _
    $region35: #{_forward_impl.1} parent=1 // pred_check_branch
      %66 = sbr.rel (0) target = $region37
    $region36: #{_forward_impl.1} parent=1 // pred_region
      %68 = dma.done [#allocation5], 1024
    $region37: #{_forward_impl.1} parent=1 // pred_fallthru
      _
    // Predicated region
    $region38: #{_forward_impl.1} parent=1 // pred_check
      _
    $region39: #{_forward_impl.1} parent=1 // pred_check_branch
      %70 = sbr.rel (0) target = $region41
    $region40: #{_forward_impl.1} parent=1 // pred_region
      %72 = dma.done [#allocation5], 1024
    $region41: #{_forward_impl.1} parent=1 // pred_fallthru
      _
    %v73 = vld [vmem:[%s0] sm:$0xff]
    %v74 = vld [vmem:[%s0 + $0x8] sm:$0xff]
    %v75 = vlaneseq
    %v76 = vand.u32 %v75, 127
    %77 = vset.pattern.permute.xlu0 0
    %78 = vperm.xlu0 %77, %v73
    %v79 = vpop.permute.xlu0 %78
    %80 = vset.pattern.permute.xlu0 0
    %81 = vperm.xlu0 %80, %v74
    %v82 = vpop.permute.xlu0 %81
    %vm83 = vcmp.eq.s32.totalorder %v76, %v79
    %vm84 = vcmp.eq.s32.totalorder %v76, %v82
    %v85 = vsel %vm83, 1, 0
    %v86 = vsel %vm84, 1, 0
    %v87 = vcvt.s32.f32 %v85
    %v88 = vcvt.s32.f32 %v86
    %v89 = vpack.c.bf16 %v88, %v87
    %v90 = vld [vmem:[#allocation2] sm:$0xf]
    %v91 = vld [vmem:[#allocation2 + $0x4] sm:$0xf]
    %v92 = vld [vmem:[#allocation2 + $0x8] sm:$0xf]
    %v93 = vld [vmem:[#allocation2 + $0xc] sm:$0xf]
    %v94 = vld [vmem:[#allocation2 + $0x10] sm:$0xf]
    %v95 = vld [vmem:[#allocation2 + $0x14] sm:$0xf]
    %v96 = vld [vmem:[#allocation2 + $0x18] sm:$0xf]
    %v97 = vld [vmem:[#allocation2 + $0x1c] sm:$0xf]
    %v98 = vld [vmem:[#allocation2 + $0x20] sm:$0xf]
    %v99 = vld [vmem:[#allocation2 + $0x24] sm:$0xf]
    %v100 = vld [vmem:[#allocation2 + $0x28] sm:$0xf]
    %v101 = vld [vmem:[#allocation2 + $0x2c] sm:$0xf]
    %v102 = vld [vmem:[#allocation2 + $0x30] sm:$0xf]
    %v103 = vld [vmem:[#allocation2 + $0x34] sm:$0xf]
    %v104 = vld [vmem:[#allocation2 + $0x38] sm:$0xf]
    %v105 = vld [vmem:[#allocation2 + $0x3c] sm:$0xf]
    %v106 = vld [vmem:[%s1] sm:$0xf]
    %v107 = vld [vmem:[%s1 + $0x4] sm:$0xf]
    %v108 = vld [vmem:[#allocation4] sm:$0xf]
    %v109 = vld [vmem:[#allocation4 + $0x4] sm:$0xf]
    %v110 = vld [vmem:[#allocation4 + $0x8] sm:$0xf]
    %v111 = vld [vmem:[#allocation4 + $0xc] sm:$0xf]
    %v112 = vld [vmem:[#allocation4 + $0x10] sm:$0xf]
    %v113 = vld [vmem:[#allocation4 + $0x14] sm:$0xf]
    %v114 = vld [vmem:[#allocation4 + $0x18] sm:$0xf]
    %v115 = vld [vmem:[#allocation4 + $0x1c] sm:$0xf]
    %v116 = vld [vmem:[#allocation4 + $0x20] sm:$0xf]
    %v117 = vld [vmem:[#allocation4 + $0x24] sm:$0xf]
    %v118 = vld [vmem:[#allocation4 + $0x28] sm:$0xf]
    %v119 = vld [vmem:[#allocation4 + $0x2c] sm:$0xf]
    %v120 = vld [vmem:[#allocation4 + $0x30] sm:$0xf]
    %v121 = vld [vmem:[#allocation4 + $0x34] sm:$0xf]
    %v122 = vld [vmem:[#allocation4 + $0x38] sm:$0xf]
    %v123 = vld [vmem:[#allocation4 + $0x3c] sm:$0xf]
    %v126 = vunpack.c.l.b16 %v106
    %v127 = vunpack.c.l.b16 %v107
    %v128 = vpack.c.b16 %v127, %v126
    %v146 = vunpack.c.l.b16 %v108
    %v147 = vunpack.c.l.b16 %v109
    %v148 = vunpack.c.l.b16 %v110
    %v149 = vunpack.c.l.b16 %v111
    %v150 = vunpack.c.l.b16 %v112
    %v151 = vunpack.c.l.b16 %v113
    %v152 = vunpack.c.l.b16 %v114
    %v153 = vunpack.c.l.b16 %v115
    %v154 = vunpack.c.l.b16 %v116
    %v155 = vunpack.c.l.b16 %v117
    %v156 = vunpack.c.l.b16 %v118
    %v157 = vunpack.c.l.b16 %v119
    %v158 = vunpack.c.l.b16 %v120
    %v159 = vunpack.c.l.b16 %v121
    %v160 = vunpack.c.l.b16 %v122
    %v161 = vunpack.c.l.b16 %v123
    %v162 = vpack.c.b16 %v147, %v146
    %v163 = vpack.c.b16 %v149, %v148
    %v164 = vpack.c.b16 %v151, %v150
    %v165 = vpack.c.b16 %v153, %v152
    %v166 = vpack.c.b16 %v155, %v154
    %v167 = vpack.c.b16 %v157, %v156
    %v168 = vpack.c.b16 %v159, %v158
    %v169 = vpack.c.b16 %v161, %v160
    %178 = vmatpush.bf16.msra.mxu0 %v169
    %179 = vmatpush.bf16.msra.mxu0 %v168
    %180 = vmatpush.bf16.msra.mxu0 %v167
    %181 = vmatpush.bf16.msra.mxu0 %v166
    %182 = vmatpush.bf16.msra.mxu0 %v165
    %183 = vmatpush.bf16.msra.mxu0 %v164
    %184 = vmatpush.bf16.msra.mxu0 %v163
    %185 = vmatpush.bf16.msra.mxu0 %v162
    %186 = vmatmul.bf16.gmra.mxu0 %v128
    %v187 = vpop.f32.mrf.mxu0
    %v188 = vadd.f32 0.0, %v187
    %v189 = vpop.f32.mrf.mxu0
    %v190 = vadd.f32 0.0, %v189
    %191 = vdwg.mxu0
    %v208 = vunpack.c.l.b16 %v90
    %v209 = vunpack.c.l.b16 %v91
    %v210 = vunpack.c.l.b16 %v92
    %v211 = vunpack.c.l.b16 %v93
    %v212 = vunpack.c.l.b16 %v94
    %v213 = vunpack.c.l.b16 %v95
    %v214 = vunpack.c.l.b16 %v96
    %v215 = vunpack.c.l.b16 %v97
    %v216 = vunpack.c.l.b16 %v98
    %v217 = vunpack.c.l.b16 %v99
    %v218 = vunpack.c.l.b16 %v100
    %v219 = vunpack.c.l.b16 %v101
    %v220 = vunpack.c.l.b16 %v102
    %v221 = vunpack.c.l.b16 %v103
    %v222 = vunpack.c.l.b16 %v104
    %v223 = vunpack.c.l.b16 %v105
    %v224 = vpack.c.b16 %v209, %v208
    %v225 = vpack.c.b16 %v211, %v210
    %v226 = vpack.c.b16 %v213, %v212
    %v227 = vpack.c.b16 %v215, %v214
    %v228 = vpack.c.b16 %v217, %v216
    %v229 = vpack.c.b16 %v219, %v218
    %v230 = vpack.c.b16 %v221, %v220
    %v231 = vpack.c.b16 %v223, %v222
    %240 = vmatpush.bf16.msra.mxu0 %v231
    %241 = vmatpush.bf16.msra.mxu0 %v230
    %242 = vmatpush.bf16.msra.mxu0 %v229
    %243 = vmatpush.bf16.msra.mxu0 %v228
    %244 = vmatpush.bf16.msra.mxu0 %v227
    %245 = vmatpush.bf16.msra.mxu0 %v226
    %246 = vmatpush.bf16.msra.mxu0 %v225
    %247 = vmatpush.bf16.msra.mxu0 %v224
    %248 = vmatmul.bf16.gmra.mxu0 %v89
    %v249 = vpop.f32.mrf.mxu0
    %v250 = vadd.f32 %v188, %v249
    %v251 = vpop.f32.mrf.mxu0
    %v252 = vadd.f32 %v190, %v251
    %253 = vdwg.mxu0
    %v254 = vld [vmem:[%s4] sm:$0x1]
    %v256 = vperm.slane %v254, 0
    %v258 = vadd.f32 %v250, %v256
    %v259 = vadd.f32 %v252, %v256
    %v260 = vxor.u32 %v258, 2147483648
    %v261 = vxor.u32 %v259, 2147483648
    %v262 = vmul.f32 %v260, 1.442695
    %v263 = vpow.pop %v262
    %v264 = vmul.f32 %v261, 1.442695
    %v265 = vpow.pop %v264
    %v266 = vadd.f32 %v263, 1.0
    %v267 = vadd.f32 %v265, 1.0
    %v268 = vrcp.pop %v266
    %v269 = vmul.f32 %v266, %v268
    %v270 = vsub.f32 1.0, %v269
    %v271 = vmul.f32 %v268, %v270
    %v272 = vadd.f32 %v268, %v271
    %vm273 = vweird.f32 %v266
    %vm274 = vweird.f32 %v268
    %vm275 = vmor %vm273, %vm274
    %v276 = vsel %vm275, %v268, %v272
    %v277 = vand.u32 2147483647, %v266
    %vm278 = vcmp.eq.f32.partialorder %v277, 8.507059e+37
    %v279 = vand.u32 %v266, 2147483648
    %v280 = vor.u32 1.1754944e-38, %v279
    %v281 = vsel %vm278, %v280, %v276
    %v282 = vmul.f32 1.0, %v281
    %v283 = vrcp.pop %v267
    %v284 = vmul.f32 %v267, %v283
    %v285 = vsub.f32 1.0, %v284
    %v286 = vmul.f32 %v283, %v285
    %v287 = vadd.f32 %v283, %v286
    %vm288 = vweird.f32 %v267
    %vm289 = vweird.f32 %v283
    %vm290 = vmor %vm288, %vm289
    %v291 = vsel %vm290, %v283, %v287
    %v292 = vand.u32 2147483647, %v267
    %vm293 = vcmp.eq.f32.partialorder %v292, 8.507059e+37
    %v294 = vand.u32 %v267, 2147483648
    %v295 = vor.u32 1.1754944e-38, %v294
    %v296 = vsel %vm293, %v295, %v291
    %v297 = vmul.f32 1.0, %v296
    %v298 = vmul.f32 %v258, %v282
    %v299 = vmul.f32 %v259, %v297
    %v300 = vpack.c.bf16 %v299, %v298
    %v301 = vld [vmem:[#allocation6] sm:$0xf]
    %v302 = vld [vmem:[#allocation6 + $0x4] sm:$0xf]
    %v303 = vld [vmem:[#allocation6 + $0x8] sm:$0xf]
    %v304 = vld [vmem:[#allocation6 + $0xc] sm:$0xf]
    %v305 = vld [vmem:[#allocation6 + $0x10] sm:$0xf]
    %v306 = vld [vmem:[#allocation6 + $0x14] sm:$0xf]
    %v307 = vld [vmem:[#allocation6 + $0x18] sm:$0xf]
    %v308 = vld [vmem:[#allocation6 + $0x1c] sm:$0xf]
    %v309 = vld [vmem:[#allocation6 + $0x20] sm:$0xf]
    %v310 = vld [vmem:[#allocation6 + $0x24] sm:$0xf]
    %v311 = vld [vmem:[#allocation6 + $0x28] sm:$0xf]
    %v312 = vld [vmem:[#allocation6 + $0x2c] sm:$0xf]
    %v313 = vld [vmem:[#allocation6 + $0x30] sm:$0xf]
    %v314 = vld [vmem:[#allocation6 + $0x34] sm:$0xf]
    %v315 = vld [vmem:[#allocation6 + $0x38] sm:$0xf]
    %v316 = vld [vmem:[#allocation6 + $0x3c] sm:$0xf]
    %v317 = vld [vmem:[%s6] sm:$0x1]
    %v319 = vperm.slane %v317, 0
    %v337 = vunpack.c.l.b16 %v301
    %v338 = vunpack.c.l.b16 %v302
    %v339 = vunpack.c.l.b16 %v303
    %v340 = vunpack.c.l.b16 %v304
    %v341 = vunpack.c.l.b16 %v305
    %v342 = vunpack.c.l.b16 %v306
    %v343 = vunpack.c.l.b16 %v307
    %v344 = vunpack.c.l.b16 %v308
    %v345 = vunpack.c.l.b16 %v309
    %v346 = vunpack.c.l.b16 %v310
    %v347 = vunpack.c.l.b16 %v311
    %v348 = vunpack.c.l.b16 %v312
    %v349 = vunpack.c.l.b16 %v313
    %v350 = vunpack.c.l.b16 %v314
    %v351 = vunpack.c.l.b16 %v315
    %v352 = vunpack.c.l.b16 %v316
    %v353 = vpack.c.b16 %v338, %v337
    %v354 = vpack.c.b16 %v340, %v339
    %v355 = vpack.c.b16 %v342, %v341
    %v356 = vpack.c.b16 %v344, %v343
    %v357 = vpack.c.b16 %v346, %v345
    %v358 = vpack.c.b16 %v348, %v347
    %v359 = vpack.c.b16 %v350, %v349
    %v360 = vpack.c.b16 %v352, %v351
    %369 = vmatpush.bf16.msra.mxu0 %v360
    %370 = vmatpush.bf16.msra.mxu0 %v359
    %371 = vmatpush.bf16.msra.mxu0 %v358
    %372 = vmatpush.bf16.msra.mxu0 %v357
    %373 = vmatpush.bf16.msra.mxu0 %v356
    %374 = vmatpush.bf16.msra.mxu0 %v355
    %375 = vmatpush.bf16.msra.mxu0 %v354
    %376 = vmatpush.bf16.msra.mxu0 %v353
    %377 = vmatmul.bf16.gmra.mxu0 %v300
    %v378 = vpop.f32.mrf.mxu0
    %v379 = vadd.f32 %v319, %v378
    %v380 = vpop.f32.mrf.mxu0
    %v381 = vadd.f32 %v319, %v380
    %382 = vdwg.mxu0
    %v383 = vpack.c.bf16 %v379, %v379
    %v384 = vpack.c.bf16 %v381, %v381
    %385 = vst [vmem:[%s7] sm:$0xf] %v383
    %386 = vst [vmem:[%s7 + $0x4] sm:$0xf] %v384
    // Predicated region
    $region42: #{_forward_impl.1} parent=1 // pred_check
      _
    $region43: #{_forward_impl.1} parent=1 // pred_check_branch
      %388 = sbr.rel (0) target = $region45
    $region44: #{_forward_impl.1} parent=1 // pred_region
      _
    $region45: #{_forward_impl.1} parent=1 // pred_fallthru
      _
    // Predicated region
    $region46: #{_forward_impl.1} parent=1 // pred_check
      _
    $region47: #{_forward_impl.1} parent=1 // pred_check_branch
      %390 = sbr.rel (0) target = $region49
    $region48: #{_forward_impl.1} parent=1 // pred_region
      _
    $region49: #{_forward_impl.1} parent=1 // pred_fallthru
      _
    %391 = vsyncpa [#allocation3], 1
    %392 = vsyncpa [#allocation5], 1

</llo_original>
